<compile_context>
chip_gen: v6e
topology: v6e:2x2x1
jax: 0.10.0
libtpu: 0.0.40
codegen_flags: <defaults>
</compile_context>

<pallas_src>
import functools

import jax
import jax.numpy as jnp
from jax.experimental import pallas as pl
from jax.experimental.pallas import tpu as pltpu


def rnn_net_kernel(x_ref, wih_ref, whh_ref, b_ref, wl_ref, bl_ref, out_ref,
                   hs_ref, *, batch, seq_len):
    """tanh-RNN recurrence + batched Linear/Tanh head.

    x_ref:   (T*B, I)  time-major flattened input
    wih_ref: (I, H)    input->hidden weight (transposed)
    whh_ref: (H, H)    hidden->hidden weight (transposed)
    b_ref:   (1, H)    folded bias (b_ih + b_hh)
    wl_ref:  (H, O)    linear weight (transposed)
    bl_ref:  (1, O)    linear bias
    out_ref: (T*B, O)  time-major per-step tanh(linear(h_t))
    hs_ref:  (T*B, H)  VMEM scratch holding all hidden states
    """
    H = whh_ref.shape[0]
    whh = whh_ref[...]

    # (1) Hoisted input projection with both biases folded in — one matmul
    #     covering every timestep.
    xw = jnp.dot(x_ref[...], wih_ref[...],
                 preferred_element_type=jnp.float32) + b_ref[...]  # (T*B, H)

    # (2) Recurrence: one hidden-state matmul + tanh per step (serial part).
    #     Static unroll over T keeps the whole chain scheduler-visible.
    h = jnp.zeros((batch, H), jnp.float32)
    for t in range(seq_len):
        h = jnp.tanh(
            xw[t * batch:(t + 1) * batch, :]
            + jnp.dot(h, whh, preferred_element_type=jnp.float32)
        )
        hs_ref[t * batch:(t + 1) * batch, :] = h

    # (3) Batched output head over all timesteps + a single output store.
    y = jnp.tanh(
        jnp.dot(hs_ref[...], wl_ref[...], preferred_element_type=jnp.float32)
        + bl_ref[...]
    )  # (T*B, O)
    out_ref[...] = y.astype(out_ref.dtype)


@jax.jit
def net_forward(x, w_ih, w_hh, b_ih, b_hh, w_l, b_l):
    B, T, I = x.shape
    H = w_hh.shape[0]
    O = w_l.shape[0]

    # Time-major flatten so the in-kernel input projection is one big matmul
    # and per-step slicing is a contiguous leading-axis window.
    x_tm = jnp.transpose(x, (1, 0, 2)).reshape(T * B, I).astype(jnp.float32)

    kernel = functools.partial(rnn_net_kernel, batch=B, seq_len=T)

    out = pl.pallas_call(
        kernel,
        out_shape=jax.ShapeDtypeStruct((T * B, O), jnp.float32),
        in_specs=[pl.BlockSpec(memory_space=pltpu.MemorySpace.VMEM)] * 6,
        out_specs=pl.BlockSpec(memory_space=pltpu.MemorySpace.VMEM),
        scratch_shapes=[pltpu.VMEM((T * B, H), jnp.float32)],
    )(
        x_tm,
        w_ih.T.astype(jnp.float32),                    # (I, H)
        w_hh.T.astype(jnp.float32),                    # (H, H)
        (b_ih + b_hh)[None, :].astype(jnp.float32),    # (1, H) folded bias
        w_l.T.astype(jnp.float32),                     # (H, O)
        b_l[None, :].astype(jnp.float32),              # (1, O)
    )

    # out is time-major (T*B, O); restore batch_first order and match
    # pred.view(B, -1, 1) from the PyTorch module.
    pred = out.reshape(T, B, O).transpose(1, 0, 2).reshape(B, T * O, 1)
    return pred


def reference_forward(x, w_ih, w_hh, b_ih, b_hh, w_l, b_l):
    """Pure-JAX reference mirroring torch.nn.RNN(batch_first=True) + Linear + Tanh."""
    B, T, _ = x.shape
    H = w_hh.shape[0]
    h = jnp.zeros((B, H), jnp.float32)
    outs = []
    for t in range(T):
        h = jnp.tanh(x[:, t, :] @ w_ih.T + b_ih + h @ w_hh.T + b_hh)
        outs.append(jnp.tanh(h @ w_l.T + b_l))
    pred = jnp.stack(outs, axis=1)  # (B, T, O)
    return pred.reshape(B, -1, 1)


if __name__ == "__main__":
    # Small shapes consistent with the module's forward.
    B, T = 2, 8          # batch, sequence length
    I, H, O = 4, 32, 1   # input_size, hidden, output_size

    key = jax.random.PRNGKey(0)
    k = jax.random.split(key, 8)

    # Deterministic parameter init (PyTorch-style uniform(-1/sqrt(H), 1/sqrt(H))).
    bound = 1.0 / jnp.sqrt(jnp.float32(H))
    w_ih = jax.random.uniform(k[0], (H, I), jnp.float32, -bound, bound)
    w_hh = jax.random.uniform(k[1], (H, H), jnp.float32, -bound, bound)
    b_ih = jax.random.uniform(k[2], (H,), jnp.float32, -bound, bound)
    b_hh = jax.random.uniform(k[3], (H,), jnp.float32, -bound, bound)
    w_l = jax.random.uniform(k[4], (O, H), jnp.float32, -bound, bound)
    b_l = jax.random.uniform(k[5], (O,), jnp.float32, -bound, bound)

    x = jax.random.normal(k[6], (B, T, I), jnp.float32)

    pred = net_forward(x, w_ih, w_hh, b_ih, b_hh, w_l, b_l)
    pred = jax.block_until_ready(pred)

    ref = reference_forward(x, w_ih, w_hh, b_ih, b_hh, w_l, b_l)
    assert pred.shape == (B, T * O, 1), pred.shape
    assert jnp.allclose(pred, ref, atol=1e-5, rtol=1e-5), "mismatch vs reference"

    print("KERNEL_OK")
</pallas_src>

<mosaic_0001>
module attributes {stable_mosaic.version = 11 : i64} {
  func.func @rnn_net_kernel(%arg0: memref<16x4xf32, #tpu.memory_space<vmem>>, %arg1: memref<4x32xf32, #tpu.memory_space<vmem>>, %arg2: memref<32x32xf32, #tpu.memory_space<vmem>>, %arg3: memref<1x32xf32, #tpu.memory_space<vmem>>, %arg4: memref<32x1xf32, #tpu.memory_space<vmem>>, %arg5: memref<1x1xf32, #tpu.memory_space<vmem>>, %arg6: memref<16x1xf32, #tpu.memory_space<vmem>>, %arg7: memref<16x32xf32, #tpu.memory_space<vmem>>) attributes {dimension_semantics = [], scalar_prefetch = 0 : i64, scratch_operands = 1 : i64, tpu.core_type = #tpu.core_type<tc>} {
    %c0 = arith.constant 0 : index
    %c0_0 = arith.constant 0 : index
    %0 = vector.load %arg2[%c0, %c0_0] : memref<32x32xf32, #tpu.memory_space<vmem>>, vector<32x32xf32>
    %c0_1 = arith.constant 0 : index
    %c0_2 = arith.constant 0 : index
    %1 = vector.load %arg0[%c0_1, %c0_2] : memref<16x4xf32, #tpu.memory_space<vmem>>, vector<16x4xf32>
    %c0_3 = arith.constant 0 : index
    %c0_4 = arith.constant 0 : index
    %2 = vector.load %arg1[%c0_3, %c0_4] : memref<4x32xf32, #tpu.memory_space<vmem>>, vector<4x32xf32>
    %cst = arith.constant dense<0.000000e+00> : vector<16x32xf32>
    %3 = tpu.matmul %1, %2, %cst {dimension_numbers = #tpu.dot_dimension_numbers<[1], [0], [0], [1], [0, 0, 1, 1], [], []>} : vector<16x4xf32>, vector<4x32xf32>, vector<16x32xf32> -> vector<16x32xf32>
    %c0_5 = arith.constant 0 : index
    %c0_6 = arith.constant 0 : index
    %4 = vector.load %arg3[%c0_5, %c0_6] : memref<1x32xf32, #tpu.memory_space<vmem>>, vector<1x32xf32>
    %5 = vector.broadcast %4 : vector<1x32xf32> to vector<16x32xf32>
    %6 = arith.addf %3, %5 : vector<16x32xf32>
    %cst_7 = arith.constant 0.000000e+00 : f32
    %7 = vector.broadcast %cst_7 : f32 to vector<2x32xf32>
    %8 = vector.extract_strided_slice %6 {offsets = [0, 0], sizes = [2, 32], strides = [1, 1]} : vector<16x32xf32> to vector<2x32xf32>
    %cst_8 = arith.constant dense<0.000000e+00> : vector<2x32xf32>
    %9 = tpu.matmul %7, %0, %cst_8 {dimension_numbers = #tpu.dot_dimension_numbers<[1], [0], [0], [1], [0, 0, 1, 1], [], []>} : vector<2x32xf32>, vector<32x32xf32>, vector<2x32xf32> -> vector<2x32xf32>
    %10 = arith.addf %8, %9 : vector<2x32xf32>
    %11 = math.tanh %10 : vector<2x32xf32>
    %c0_9 = arith.constant 0 : index
    %c0_10 = arith.constant 0 : index
    %12 = vector.load %arg7[%c0_9, %c0_10] : memref<16x32xf32, #tpu.memory_space<vmem>>, vector<2x32xf32>
    tpu.vector_store %arg7[%c0_9, %c0_10], %11 {strides = array<i32>} : memref<16x32xf32, #tpu.memory_space<vmem>>, vector<2x32xf32>,
    %13 = vector.extract_strided_slice %6 {offsets = [2, 0], sizes = [2, 32], strides = [1, 1]} : vector<16x32xf32> to vector<2x32xf32>
    %cst_11 = arith.constant dense<0.000000e+00> : vector<2x32xf32>
    %14 = tpu.matmul %11, %0, %cst_11 {dimension_numbers = #tpu.dot_dimension_numbers<[1], [0], [0], [1], [0, 0, 1, 1], [], []>} : vector<2x32xf32>, vector<32x32xf32>, vector<2x32xf32> -> vector<2x32xf32>
    %15 = arith.addf %13, %14 : vector<2x32xf32>
    %16 = math.tanh %15 : vector<2x32xf32>
    %c2 = arith.constant 2 : index
    %c0_12 = arith.constant 0 : index
    %17 = vector.load %arg7[%c2, %c0_12] : memref<16x32xf32, #tpu.memory_space<vmem>>, vector<2x32xf32>
    tpu.vector_store %arg7[%c2, %c0_12], %16 {strides = array<i32>} : memref<16x32xf32, #tpu.memory_space<vmem>>, vector<2x32xf32>,
    %18 = vector.extract_strided_slice %6 {offsets = [4, 0], sizes = [2, 32], strides = [1, 1]} : vector<16x32xf32> to vector<2x32xf32>
    %cst_13 = arith.constant dense<0.000000e+00> : vector<2x32xf32>
    %19 = tpu.matmul %16, %0, %cst_13 {dimension_numbers = #tpu.dot_dimension_numbers<[1], [0], [0], [1], [0, 0, 1, 1], [], []>} : vector<2x32xf32>, vector<32x32xf32>, vector<2x32xf32> -> vector<2x32xf32>
    %20 = arith.addf %18, %19 : vector<2x32xf32>
    %21 = math.tanh %20 : vector<2x32xf32>
    %c4 = arith.constant 4 : index
    %c0_14 = arith.constant 0 : index
    %22 = vector.load %arg7[%c4, %c0_14] : memref<16x32xf32, #tpu.memory_space<vmem>>, vector<2x32xf32>
    tpu.vector_store %arg7[%c4, %c0_14], %21 {strides = array<i32>} : memref<16x32xf32, #tpu.memory_space<vmem>>, vector<2x32xf32>,
    %23 = vector.extract_strided_slice %6 {offsets = [6, 0], sizes = [2, 32], strides = [1, 1]} : vector<16x32xf32> to vector<2x32xf32>
    %cst_15 = arith.constant dense<0.000000e+00> : vector<2x32xf32>
    %24 = tpu.matmul %21, %0, %cst_15 {dimension_numbers = #tpu.dot_dimension_numbers<[1], [0], [0], [1], [0, 0, 1, 1], [], []>} : vector<2x32xf32>, vector<32x32xf32>, vector<2x32xf32> -> vector<2x32xf32>
    %25 = arith.addf %23, %24 : vector<2x32xf32>
    %26 = math.tanh %25 : vector<2x32xf32>
    %c6 = arith.constant 6 : index
    %c0_16 = arith.constant 0 : index
    %27 = vector.load %arg7[%c6, %c0_16] : memref<16x32xf32, #tpu.memory_space<vmem>>, vector<2x32xf32>
    tpu.vector_store %arg7[%c6, %c0_16], %26 {strides = array<i32>} : memref<16x32xf32, #tpu.memory_space<vmem>>, vector<2x32xf32>,
    %28 = vector.extract_strided_slice %6 {offsets = [8, 0], sizes = [2, 32], strides = [1, 1]} : vector<16x32xf32> to vector<2x32xf32>
    %cst_17 = arith.constant dense<0.000000e+00> : vector<2x32xf32>
    %29 = tpu.matmul %26, %0, %cst_17 {dimension_numbers = #tpu.dot_dimension_numbers<[1], [0], [0], [1], [0, 0, 1, 1], [], []>} : vector<2x32xf32>, vector<32x32xf32>, vector<2x32xf32> -> vector<2x32xf32>
    %30 = arith.addf %28, %29 : vector<2x32xf32>
    %31 = math.tanh %30 : vector<2x32xf32>
    %c8 = arith.constant 8 : index
    %c0_18 = arith.constant 0 : index
    %32 = vector.load %arg7[%c8, %c0_18] : memref<16x32xf32, #tpu.memory_space<vmem>>, vector<2x32xf32>
    tpu.vector_store %arg7[%c8, %c0_18], %31 {strides = array<i32>} : memref<16x32xf32, #tpu.memory_space<vmem>>, vector<2x32xf32>,
    %33 = vector.extract_strided_slice %6 {offsets = [10, 0], sizes = [2, 32], strides = [1, 1]} : vector<16x32xf32> to vector<2x32xf32>
    %cst_19 = arith.constant dense<0.000000e+00> : vector<2x32xf32>
    %34 = tpu.matmul %31, %0, %cst_19 {dimension_numbers = #tpu.dot_dimension_numbers<[1], [0], [0], [1], [0, 0, 1, 1], [], []>} : vector<2x32xf32>, vector<32x32xf32>, vector<2x32xf32> -> vector<2x32xf32>
    %35 = arith.addf %33, %34 : vector<2x32xf32>
    %36 = math.tanh %35 : vector<2x32xf32>
    %c10 = arith.constant 10 : index
    %c0_20 = arith.constant 0 : index
    %37 = vector.load %arg7[%c10, %c0_20] : memref<16x32xf32, #tpu.memory_space<vmem>>, vector<2x32xf32>
    tpu.vector_store %arg7[%c10, %c0_20], %36 {strides = array<i32>} : memref<16x32xf32, #tpu.memory_space<vmem>>, vector<2x32xf32>,
    %38 = vector.extract_strided_slice %6 {offsets = [12, 0], sizes = [2, 32], strides = [1, 1]} : vector<16x32xf32> to vector<2x32xf32>
    %cst_21 = arith.constant dense<0.000000e+00> : vector<2x32xf32>
    %39 = tpu.matmul %36, %0, %cst_21 {dimension_numbers = #tpu.dot_dimension_numbers<[1], [0], [0], [1], [0, 0, 1, 1], [], []>} : vector<2x32xf32>, vector<32x32xf32>, vector<2x32xf32> -> vector<2x32xf32>
    %40 = arith.addf %38, %39 : vector<2x32xf32>
    %41 = math.tanh %40 : vector<2x32xf32>
    %c12 = arith.constant 12 : index
    %c0_22 = arith.constant 0 : index
    %42 = vector.load %arg7[%c12, %c0_22] : memref<16x32xf32, #tpu.memory_space<vmem>>, vector<2x32xf32>
    tpu.vector_store %arg7[%c12, %c0_22], %41 {strides = array<i32>} : memref<16x32xf32, #tpu.memory_space<vmem>>, vector<2x32xf32>,
    %43 = vector.extract_strided_slice %6 {offsets = [14, 0], sizes = [2, 32], strides = [1, 1]} : vector<16x32xf32> to vector<2x32xf32>
    %cst_23 = arith.constant dense<0.000000e+00> : vector<2x32xf32>
    %44 = tpu.matmul %41, %0, %cst_23 {dimension_numbers = #tpu.dot_dimension_numbers<[1], [0], [0], [1], [0, 0, 1, 1], [], []>} : vector<2x32xf32>, vector<32x32xf32>, vector<2x32xf32> -> vector<2x32xf32>
    %45 = arith.addf %43, %44 : vector<2x32xf32>
    %46 = math.tanh %45 : vector<2x32xf32>
    %c14 = arith.constant 14 : index
    %c0_24 = arith.constant 0 : index
    %47 = vector.load %arg7[%c14, %c0_24] : memref<16x32xf32, #tpu.memory_space<vmem>>, vector<2x32xf32>
    tpu.vector_store %arg7[%c14, %c0_24], %46 {strides = array<i32>} : memref<16x32xf32, #tpu.memory_space<vmem>>, vector<2x32xf32>,
    %c0_25 = arith.constant 0 : index
    %c0_26 = arith.constant 0 : index
    %48 = vector.load %arg7[%c0_25, %c0_26] : memref<16x32xf32, #tpu.memory_space<vmem>>, vector<16x32xf32>
    %c0_27 = arith.constant 0 : index
    %c0_28 = arith.constant 0 : index
    %49 = vector.load %arg4[%c0_27, %c0_28] : memref<32x1xf32, #tpu.memory_space<vmem>>, vector<32x1xf32>
    %cst_29 = arith.constant dense<0.000000e+00> : vector<16x1xf32>
    %50 = tpu.matmul %48, %49, %cst_29 {dimension_numbers = #tpu.dot_dimension_numbers<[1], [0], [0], [1], [0, 0, 1, 1], [], []>} : vector<16x32xf32>, vector<32x1xf32>, vector<16x1xf32> -> vector<16x1xf32>
    %c0_30 = arith.constant 0 : index
    %c0_31 = arith.constant 0 : index
    %51 = vector.load %arg5[%c0_30, %c0_31] : memref<1x1xf32, #tpu.memory_space<vmem>>, vector<1x1xf32>
    %52 = vector.broadcast %51 : vector<1x1xf32> to vector<16x1xf32>
    %53 = arith.addf %50, %52 : vector<16x1xf32>
    %54 = math.tanh %53 : vector<16x1xf32>
    %c0_32 = arith.constant 0 : index
    %c0_33 = arith.constant 0 : index
    %55 = vector.load %arg6[%c0_32, %c0_33] : memref<16x1xf32, #tpu.memory_space<vmem>>, vector<16x1xf32>
    tpu.vector_store %arg6[%c0_32, %c0_33], %54 {strides = array<i32>} : memref<16x1xf32, #tpu.memory_space<vmem>>, vector<16x1xf32>,
    return
  }
}

</mosaic_0001>

<llo_original>
// kernel: net_forward.1
$region0: #{net_forward.1}
  #allocation0 [shape = 'u32[]', space=smem, size = 0x4, offset = 0x4, fixed_abs, tag = 'smem constant byte address 0x4 - core index']
  #allocation1 [shape = 'u32[144,128]{1,0:T(1,128)}', space=vmem, size = 0x12000, scoped, tag = 'internal scratch']
  #allocation2 [shape = 'f32[16,32]{1,0:T(8,128)}', space=vmem, size = 0x2000, scoped, tag = 'scratch operand']
  #allocation3 [shape = 'f32[1,1]{1,0:T(1,128)S(1)}', space=vmem, size = 0x200, scoped, tag = 'scoped memory for net_forward.1']
  %s0 = inlined_call_operand.vmem [shape: f32[16,4], index: 0, kind: input, shape index: {}]
  %s1 = inlined_call_operand.vmem [shape: f32[4,32], index: 1, kind: input, shape index: {}]
  %s2 = inlined_call_operand.vmem [shape: f32[32,32], index: 2, kind: input, shape index: {}]
  %s3 = inlined_call_operand.vmem [shape: f32[1,32], index: 3, kind: input, shape index: {}]
  %s4 = inlined_call_operand.vmem [shape: f32[32,1], index: 4, kind: input, shape index: {}]
  %s5 = inlined_call_operand.<no memory space> [shape: f32[1,1], index: 5, kind: input, shape index: {}]
  %s6 = inlined_call_operand.vmem [shape: f32[16,1], index: 6, kind: output, shape index: {}]
  %s7 = sld [smem:[#allocation0]]
  $region34: #{net_forward.1} parent=0
    _
  %s9 = ssub.s32 1, %s7
  %s10 = scalar_select 0, %s9, %s7
  %v11 = vstv %s5
  %12 = vst [vmem:[#allocation3] sm:$0x1] %v11
  // Predicated region
  $region2: #{net_forward.1} parent=0 // pred_check
    _
  $region3: #{net_forward.1} parent=0 // pred_check_branch
    %14 = sbr.rel (0) target = $region5
  $region4: #{net_forward.1} parent=0 // pred_region
    _
  $region5: #{net_forward.1} parent=0 // pred_fallthru
    _
  // Predicated region
  $region6: #{net_forward.1} parent=0 // pred_check
    _
  $region7: #{net_forward.1} parent=0 // pred_check_branch
    %16 = sbr.rel (0) target = $region9
  $region8: #{net_forward.1} parent=0 // pred_region
    _
  $region9: #{net_forward.1} parent=0 // pred_fallthru
    _
  // Predicated region
  $region10: #{net_forward.1} parent=0 // pred_check
    _
  $region11: #{net_forward.1} parent=0 // pred_check_branch
    %18 = sbr.rel (0) target = $region13
  $region12: #{net_forward.1} parent=0 // pred_region
    _
  $region13: #{net_forward.1} parent=0 // pred_fallthru
    _
  // Predicated region
  $region14: #{net_forward.1} parent=0 // pred_check
    _
  $region15: #{net_forward.1} parent=0 // pred_check_branch
    %20 = sbr.rel (0) target = $region17
  $region16: #{net_forward.1} parent=0 // pred_region
    _
  $region17: #{net_forward.1} parent=0 // pred_fallthru
    _
  // Predicated region
  $region18: #{net_forward.1} parent=0 // pred_check
    _
  $region19: #{net_forward.1} parent=0 // pred_check_branch
    %22 = sbr.rel (0) target = $region21
  $region20: #{net_forward.1} parent=0 // pred_region
    _
  $region21: #{net_forward.1} parent=0 // pred_fallthru
    _
  // Predicated region
  $region22: #{net_forward.1} parent=0 // pred_check
    _
  $region23: #{net_forward.1} parent=0 // pred_check_branch
    %24 = sbr.rel (0) target = $region25
  $region24: #{net_forward.1} parent=0 // pred_region
    _
  $region25: #{net_forward.1} parent=0 // pred_fallthru
    _
  %v25 = vld [vmem:[%s2] sm:$0xff]
  %v26 = vld [vmem:[%s2 + $0x8] sm:$0xff]
  %v27 = vld [vmem:[%s2 + $0x10] sm:$0xff]
  %v28 = vld [vmem:[%s2 + $0x18] sm:$0xff]
  %v29 = vld [vmem:[%s0] sm:$0xff]
  %v30 = vld [vmem:[%s0 + $0x8] sm:$0xff]
  %v31 = vld [vmem:[%s1] sm:$0xf]
  %v32 = vld [vmem:[%s3] sm:$0x1]
  %v34 = vlaneseq
  %v35 = vshrl.u32 %v34, 7
  %v36 = vsub.s32 0, %v35
  %v37 = vrot.slane %v32, %v36
  %vm39 = vcmask 31744
  %v41 = vsel %vm39, %v29, 0
  %v44 = vsel %vm39, %v30, 0
  %vm46 = vcmask 1043456
  %v48 = vsel %vm46, %v31, 0
  %50 = vmatprep.subr.mxu0 0.0
  %51 = vmatpush1.msra.mxu0 0.0
  %52 = vmatprep.subr.mxu0 0.0
  %53 = vmatpush1.msra.mxu0 0.0
  %54 = vmatprep.subr.mxu0 0.0
  %55 = vmatpush1.msra.mxu0 0.0
  %56 = vmatprep.subr.mxu0 0.0
  %57 = vmatpush1.msra.mxu0 0.0
  %58 = vmatprep.subr.mxu0 0.0
  %59 = vmatpush1.msra.mxu0 0.0
  %60 = vmatprep.subr.mxu0 0.0
  %61 = vmatpush1.msra.mxu0 0.0
  %62 = vmatprep.subr.mxu0 0.0
  %63 = vmatpush1.msra.mxu0 0.0
  %64 = vmatprep.subr.mxu0 0.0
  %65 = vmatpush1.msra.mxu0 0.0
  %66 = vmatprep.subr.mxu0 0.0
  %67 = vmatpush1.msra.mxu0 0.0
  %68 = vmatprep.subr.mxu0 0.0
  %69 = vmatpush1.msra.mxu0 0.0
  %70 = vmatprep.subr.mxu0 0.0
  %71 = vmatpush1.msra.mxu0 0.0
  %72 = vmatprep.subr.mxu0 0.0
  %73 = vmatpush1.msra.mxu0 0.0
  %74 = vmatprep.subr.mxu0 0.0
  %75 = vmatpush1.msra.mxu0 0.0
  %76 = vmatprep.subr.mxu0 0.0
  %77 = vmatpush1.msra.mxu0 0.0
  %78 = vmatprep.subr.mxu0 0.0
  %79 = vmatpush1.msra.mxu0 0.0
  %80 = vmatprep.subr.mxu0 0.0
  %81 = vmatpush1.msra.mxu0 %v48
  %82 = vmatprep.subr.mxu0 0.0
  %83 = vmatpush2.msra.mxu0 0.0
  %84 = vmatprep.subr.mxu0 0.0
  %85 = vmatpush2.msra.mxu0 0.0
  %86 = vmatprep.subr.mxu0 0.0
  %87 = vmatpush2.msra.mxu0 0.0
  %88 = vmatprep.subr.mxu0 0.0
  %89 = vmatpush2.msra.mxu0 0.0
  %90 = vmatprep.subr.mxu0 0.0
  %91 = vmatpush2.msra.mxu0 0.0
  %92 = vmatprep.subr.mxu0 0.0
  %93 = vmatpush2.msra.mxu0 0.0
  %94 = vmatprep.subr.mxu0 0.0
  %95 = vmatpush2.msra.mxu0 0.0
  %96 = vmatprep.subr.mxu0 0.0
  %97 = vmatpush2.msra.mxu0 0.0
  %98 = vmatprep.subr.mxu0 0.0
  %99 = vmatpush2.msra.mxu0 0.0
  %100 = vmatprep.subr.mxu0 0.0
  %101 = vmatpush2.msra.mxu0 0.0
  %102 = vmatprep.subr.mxu0 0.0
  %103 = vmatpush2.msra.mxu0 0.0
  %104 = vmatprep.subr.mxu0 0.0
  %105 = vmatpush2.msra.mxu0 0.0
  %106 = vmatprep.subr.mxu0 0.0
  %107 = vmatpush2.msra.mxu0 0.0
  %108 = vmatprep.subr.mxu0 0.0
  %109 = vmatpush2.msra.mxu0 0.0
  %110 = vmatprep.subr.mxu0 0.0
  %111 = vmatpush2.msra.mxu0 0.0
  %112 = vmatprep.subr.mxu0 0.0
  %113 = vmatpush2.msra.mxu0 0.0
  %114 = vmatprep.mubr.f32.mxu0 0.0
  %115 = vmatmul.mubr.f32.gmra.mxu0 %v41
  %v116 = vpop.f32.mrf.mxu0
  %v117 = vadd.f32 %v37, %v116
  %v118 = vpop.f32.mrf.mxu0
  %119 = vmatprep.mubr.f32.mxu0 0.0
  %120 = vmatmul.mubr.f32.gmra.mxu0 %v44
  %v121 = vpop.f32.mrf.mxu0
  %v122 = vadd.f32 %v37, %v121
  %v123 = vpop.f32.mrf.mxu0
  %124 = vdwg.mxu0
  %vm125 = vcmask 261120
  %v127 = vsel %vm125, 0.0, 0
  %129 = vmatprep.subr.mxu0 0.0
  %130 = vmatpush1.msra.mxu0 0.0
  %131 = vmatprep.subr.mxu0 0.0
  %132 = vmatpush1.msra.mxu0 0.0
  %133 = vmatprep.subr.mxu0 0.0
  %134 = vmatpush1.msra.mxu0 0.0
  %135 = vmatprep.subr.mxu0 0.0
  %136 = vmatpush1.msra.mxu0 0.0
  %137 = vmatprep.subr.mxu0 0.0
  %138 = vmatpush1.msra.mxu0 0.0
  %139 = vmatprep.subr.mxu0 0.0
  %140 = vmatpush1.msra.mxu0 0.0
  %141 = vmatprep.subr.mxu0 0.0
  %142 = vmatpush1.msra.mxu0 0.0
  %143 = vmatprep.subr.mxu0 0.0
  %144 = vmatpush1.msra.mxu0 0.0
  %145 = vmatprep.subr.mxu0 0.0
  %146 = vmatpush1.msra.mxu0 0.0
  %147 = vmatprep.subr.mxu0 0.0
  %148 = vmatpush1.msra.mxu0 0.0
  %149 = vmatprep.subr.mxu0 0.0
  %150 = vmatpush1.msra.mxu0 0.0
  %151 = vmatprep.subr.mxu0 0.0
  %152 = vmatpush1.msra.mxu0 0.0
  %153 = vmatprep.subr.mxu0 0.0
  %154 = vmatpush1.msra.mxu0 %v28
  %155 = vmatprep.subr.mxu0 0.0
  %156 = vmatpush1.msra.mxu0 %v27
  %157 = vmatprep.subr.mxu0 0.0
  %158 = vmatpush1.msra.mxu0 %v26
  %159 = vmatprep.subr.mxu0 0.0
  %160 = vmatpush1.msra.mxu0 %v25
  %161 = vmatprep.subr.mxu0 0.0
  %162 = vmatpush2.msra.mxu0 0.0
  %163 = vmatprep.subr.mxu0 0.0
  %164 = vmatpush2.msra.mxu0 0.0
  %165 = vmatprep.subr.mxu0 0.0
  %166 = vmatpush2.msra.mxu0 0.0
  %167 = vmatprep.subr.mxu0 0.0
  %168 = vmatpush2.msra.mxu0 0.0
  %169 = vmatprep.subr.mxu0 0.0
  %170 = vmatpush2.msra.mxu0 0.0
  %171 = vmatprep.subr.mxu0 0.0
  %172 = vmatpush2.msra.mxu0 0.0
  %173 = vmatprep.subr.mxu0 0.0
  %174 = vmatpush2.msra.mxu0 0.0
  %175 = vmatprep.subr.mxu0 0.0
  %176 = vmatpush2.msra.mxu0 0.0
  %177 = vmatprep.subr.mxu0 0.0
  %178 = vmatpush2.msra.mxu0 0.0
  %179 = vmatprep.subr.mxu0 0.0
  %180 = vmatpush2.msra.mxu0 0.0
  %181 = vmatprep.subr.mxu0 0.0
  %182 = vmatpush2.msra.mxu0 0.0
  %183 = vmatprep.subr.mxu0 0.0
  %184 = vmatpush2.msra.mxu0 0.0
  %185 = vmatprep.subr.mxu0 0.0
  %186 = vmatpush2.msra.mxu0 0.0
  %187 = vmatprep.subr.mxu0 0.0
  %188 = vmatpush2.msra.mxu0 0.0
  %189 = vmatprep.subr.mxu0 0.0
  %190 = vmatpush2.msra.mxu0 0.0
  %191 = vmatprep.subr.mxu0 0.0
  %192 = vmatpush2.msra.mxu0 0.0
  %193 = vmatprep.mubr.f32.mxu0 0.0
  %194 = vmatmul.mubr.f32.gmra.mxu0 %v127
  %v195 = vpop.f32.mrf.mxu0
  %v196 = vadd.f32 0.0, %v195
  %v197 = vpop.f32.mrf.mxu0
  %198 = vdwg.mxu0
  %v199 = vadd.f32 %v117, %v196
  %v200 = vtanh.pop %v199
  %vm201 = vcmask 254976
  %202 = vst.msk [vmem:[#allocation2] sm:$0x3] %vm201, %v200
  %v204 = vsel %vm125, %v200, 0
  %206 = vmatprep.subr.mxu0 0.0
  %207 = vmatpush1.msra.mxu0 0.0
  %208 = vmatprep.subr.mxu0 0.0
  %209 = vmatpush1.msra.mxu0 0.0
  %210 = vmatprep.subr.mxu0 0.0
  %211 = vmatpush1.msra.mxu0 0.0
  %212 = vmatprep.subr.mxu0 0.0
  %213 = vmatpush1.msra.mxu0 0.0
  %214 = vmatprep.subr.mxu0 0.0
  %215 = vmatpush1.msra.mxu0 0.0
  %216 = vmatprep.subr.mxu0 0.0
  %217 = vmatpush1.msra.mxu0 0.0
  %218 = vmatprep.subr.mxu0 0.0
  %219 = vmatpush1.msra.mxu0 0.0
  %220 = vmatprep.subr.mxu0 0.0
  %221 = vmatpush1.msra.mxu0 0.0
  %222 = vmatprep.subr.mxu0 0.0
  %223 = vmatpush1.msra.mxu0 0.0
  %224 = vmatprep.subr.mxu0 0.0
  %225 = vmatpush1.msra.mxu0 0.0
  %226 = vmatprep.subr.mxu0 0.0
  %227 = vmatpush1.msra.mxu0 0.0
  %228 = vmatprep.subr.mxu0 0.0
  %229 = vmatpush1.msra.mxu0 0.0
  %230 = vmatprep.subr.mxu0 0.0
  %231 = vmatpush1.msra.mxu0 %v28
  %232 = vmatprep.subr.mxu0 0.0
  %233 = vmatpush1.msra.mxu0 %v27
  %234 = vmatprep.subr.mxu0 0.0
  %235 = vmatpush1.msra.mxu0 %v26
  %236 = vmatprep.subr.mxu0 0.0
  %237 = vmatpush1.msra.mxu0 %v25
  %238 = vmatprep.subr.mxu0 0.0
  %239 = vmatpush2.msra.mxu0 0.0
  %240 = vmatprep.subr.mxu0 0.0
  %241 = vmatpush2.msra.mxu0 0.0
  %242 = vmatprep.subr.mxu0 0.0
  %243 = vmatpush2.msra.mxu0 0.0
  %244 = vmatprep.subr.mxu0 0.0
  %245 = vmatpush2.msra.mxu0 0.0
  %246 = vmatprep.subr.mxu0 0.0
  %247 = vmatpush2.msra.mxu0 0.0
  %248 = vmatprep.subr.mxu0 0.0
  %249 = vmatpush2.msra.mxu0 0.0
  %250 = vmatprep.subr.mxu0 0.0
  %251 = vmatpush2.msra.mxu0 0.0
  %252 = vmatprep.subr.mxu0 0.0
  %253 = vmatpush2.msra.mxu0 0.0
  %254 = vmatprep.subr.mxu0 0.0
  %255 = vmatpush2.msra.mxu0 0.0
  %256 = vmatprep.subr.mxu0 0.0
  %257 = vmatpush2.msra.mxu0 0.0
  %258 = vmatprep.subr.mxu0 0.0
  %259 = vmatpush2.msra.mxu0 0.0
  %260 = vmatprep.subr.mxu0 0.0
  %261 = vmatpush2.msra.mxu0 0.0
  %262 = vmatprep.subr.mxu0 0.0
  %263 = vmatpush2.msra.mxu0 0.0
  %264 = vmatprep.subr.mxu0 0.0
  %265 = vmatpush2.msra.mxu0 0.0
  %266 = vmatprep.subr.mxu0 0.0
  %267 = vmatpush2.msra.mxu0 0.0
  %268 = vmatprep.subr.mxu0 0.0
  %269 = vmatpush2.msra.mxu0 0.0
  %270 = vmatprep.mubr.f32.mxu0 0.0
  %271 = vmatmul.mubr.f32.gmra.mxu0 %v204
  %v272 = vpop.f32.mrf.mxu0
  %v273 = vadd.f32 0.0, %v272
  %v274 = vpop.f32.mrf.mxu0
  %275 = vdwg.mxu0
  %v277 = vrot.slane %v273, 6
  %v279 = vadd.f32 %v117, %v277
  %v280 = vtanh.pop %v279
  %vm281 = vcmask 257026
  %282 = vst.msk [vmem:[#allocation2] sm:$0xc] %vm281, %v280
  %v284 = vrot.slane %v280, 2
  %v285 = vsel %vm125, %v284, 0
  %287 = vmatprep.subr.mxu0 0.0
  %288 = vmatpush1.msra.mxu0 0.0
  %289 = vmatprep.subr.mxu0 0.0
  %290 = vmatpush1.msra.mxu0 0.0
  %291 = vmatprep.subr.mxu0 0.0
  %292 = vmatpush1.msra.mxu0 0.0
  %293 = vmatprep.subr.mxu0 0.0
  %294 = vmatpush1.msra.mxu0 0.0
  %295 = vmatprep.subr.mxu0 0.0
  %296 = vmatpush1.msra.mxu0 0.0
  %297 = vmatprep.subr.mxu0 0.0
  %298 = vmatpush1.msra.mxu0 0.0
  %299 = vmatprep.subr.mxu0 0.0
  %300 = vmatpush1.msra.mxu0 0.0
  %301 = vmatprep.subr.mxu0 0.0
  %302 = vmatpush1.msra.mxu0 0.0
  %303 = vmatprep.subr.mxu0 0.0
  %304 = vmatpush1.msra.mxu0 0.0
  %305 = vmatprep.subr.mxu0 0.0
  %306 = vmatpush1.msra.mxu0 0.0
  %307 = vmatprep.subr.mxu0 0.0
  %308 = vmatpush1.msra.mxu0 0.0
  %309 = vmatprep.subr.mxu0 0.0
  %310 = vmatpush1.msra.mxu0 0.0
  %311 = vmatprep.subr.mxu0 0.0
  %312 = vmatpush1.msra.mxu0 %v28
  %313 = vmatprep.subr.mxu0 0.0
  %314 = vmatpush1.msra.mxu0 %v27
  %315 = vmatprep.subr.mxu0 0.0
  %316 = vmatpush1.msra.mxu0 %v26
  %317 = vmatprep.subr.mxu0 0.0
  %318 = vmatpush1.msra.mxu0 %v25
  %319 = vmatprep.subr.mxu0 0.0
  %320 = vmatpush2.msra.mxu0 0.0
  %321 = vmatprep.subr.mxu0 0.0
  %322 = vmatpush2.msra.mxu0 0.0
  %323 = vmatprep.subr.mxu0 0.0
  %324 = vmatpush2.msra.mxu0 0.0
  %325 = vmatprep.subr.mxu0 0.0
  %326 = vmatpush2.msra.mxu0 0.0
  %327 = vmatprep.subr.mxu0 0.0
  %328 = vmatpush2.msra.mxu0 0.0
  %329 = vmatprep.subr.mxu0 0.0
  %330 = vmatpush2.msra.mxu0 0.0
  %331 = vmatprep.subr.mxu0 0.0
  %332 = vmatpush2.msra.mxu0 0.0
  %333 = vmatprep.subr.mxu0 0.0
  %334 = vmatpush2.msra.mxu0 0.0
  %335 = vmatprep.subr.mxu0 0.0
  %336 = vmatpush2.msra.mxu0 0.0
  %337 = vmatprep.subr.mxu0 0.0
  %338 = vmatpush2.msra.mxu0 0.0
  %339 = vmatprep.subr.mxu0 0.0
  %340 = vmatpush2.msra.mxu0 0.0
  %341 = vmatprep.subr.mxu0 0.0
  %342 = vmatpush2.msra.mxu0 0.0
  %343 = vmatprep.subr.mxu0 0.0
  %344 = vmatpush2.msra.mxu0 0.0
  %345 = vmatprep.subr.mxu0 0.0
  %346 = vmatpush2.msra.mxu0 0.0
  %347 = vmatprep.subr.mxu0 0.0
  %348 = vmatpush2.msra.mxu0 0.0
  %349 = vmatprep.subr.mxu0 0.0
  %350 = vmatpush2.msra.mxu0 0.0
  %351 = vmatprep.mubr.f32.mxu0 0.0
  %352 = vmatmul.mubr.f32.gmra.mxu0 %v285
  %v353 = vpop.f32.mrf.mxu0
  %v354 = vadd.f32 0.0, %v353
  %v355 = vpop.f32.mrf.mxu0
  %356 = vdwg.mxu0
  %v358 = vrot.slane %v354, 4
  %v360 = vadd.f32 %v117, %v358
  %v361 = vtanh.pop %v360
  %vm362 = vcmask 259076
  %363 = vst.msk [vmem:[#allocation2] sm:$0x30] %vm362, %v361
  %v365 = vrot.slane %v361, 4
  %v366 = vsel %vm125, %v365, 0
  %368 = vmatprep.subr.mxu0 0.0
  %369 = vmatpush1.msra.mxu0 0.0
  %370 = vmatprep.subr.mxu0 0.0
  %371 = vmatpush1.msra.mxu0 0.0
  %372 = vmatprep.subr.mxu0 0.0
  %373 = vmatpush1.msra.mxu0 0.0
  %374 = vmatprep.subr.mxu0 0.0
  %375 = vmatpush1.msra.mxu0 0.0
  %376 = vmatprep.subr.mxu0 0.0
  %377 = vmatpush1.msra.mxu0 0.0
  %378 = vmatprep.subr.mxu0 0.0
  %379 = vmatpush1.msra.mxu0 0.0
  %380 = vmatprep.subr.mxu0 0.0
  %381 = vmatpush1.msra.mxu0 0.0
  %382 = vmatprep.subr.mxu0 0.0
  %383 = vmatpush1.msra.mxu0 0.0
  %384 = vmatprep.subr.mxu0 0.0
  %385 = vmatpush1.msra.mxu0 0.0
  %386 = vmatprep.subr.mxu0 0.0
  %387 = vmatpush1.msra.mxu0 0.0
  %388 = vmatprep.subr.mxu0 0.0
  %389 = vmatpush1.msra.mxu0 0.0
  %390 = vmatprep.subr.mxu0 0.0
  %391 = vmatpush1.msra.mxu0 0.0
  %392 = vmatprep.subr.mxu0 0.0
  %393 = vmatpush1.msra.mxu0 %v28
  %394 = vmatprep.subr.mxu0 0.0
  %395 = vmatpush1.msra.mxu0 %v27
  %396 = vmatprep.subr.mxu0 0.0
  %397 = vmatpush1.msra.mxu0 %v26
  %398 = vmatprep.subr.mxu0 0.0
  %399 = vmatpush1.msra.mxu0 %v25
  %400 = vmatprep.subr.mxu0 0.0
  %401 = vmatpush2.msra.mxu0 0.0
  %402 = vmatprep.subr.mxu0 0.0
  %403 = vmatpush2.msra.mxu0 0.0
  %404 = vmatprep.subr.mxu0 0.0
  %405 = vmatpush2.msra.mxu0 0.0
  %406 = vmatprep.subr.mxu0 0.0
  %407 = vmatpush2.msra.mxu0 0.0
  %408 = vmatprep.subr.mxu0 0.0
  %409 = vmatpush2.msra.mxu0 0.0
  %410 = vmatprep.subr.mxu0 0.0
  %411 = vmatpush2.msra.mxu0 0.0
  %412 = vmatprep.subr.mxu0 0.0
  %413 = vmatpush2.msra.mxu0 0.0
  %414 = vmatprep.subr.mxu0 0.0
  %415 = vmatpush2.msra.mxu0 0.0
  %416 = vmatprep.subr.mxu0 0.0
  %417 = vmatpush2.msra.mxu0 0.0
  %418 = vmatprep.subr.mxu0 0.0
  %419 = vmatpush2.msra.mxu0 0.0
  %420 = vmatprep.subr.mxu0 0.0
  %421 = vmatpush2.msra.mxu0 0.0
  %422 = vmatprep.subr.mxu0 0.0
  %423 = vmatpush2.msra.mxu0 0.0
  %424 = vmatprep.subr.mxu0 0.0
  %425 = vmatpush2.msra.mxu0 0.0
  %426 = vmatprep.subr.mxu0 0.0
  %427 = vmatpush2.msra.mxu0 0.0
  %428 = vmatprep.subr.mxu0 0.0
  %429 = vmatpush2.msra.mxu0 0.0
  %430 = vmatprep.subr.mxu0 0.0
  %431 = vmatpush2.msra.mxu0 0.0
  %432 = vmatprep.mubr.f32.mxu0 0.0
  %433 = vmatmul.mubr.f32.gmra.mxu0 %v366
  %v434 = vpop.f32.mrf.mxu0
  %v435 = vadd.f32 0.0, %v434
  %v436 = vpop.f32.mrf.mxu0
  %437 = vdwg.mxu0
  %v439 = vrot.slane %v435, 2
  %v441 = vadd.f32 %v117, %v439
  %v442 = vtanh.pop %v441
  %vm443 = vcmask 261126
  %444 = vst.msk [vmem:[#allocation2] sm:$0xc0] %vm443, %v442
  %v446 = vrot.slane %v442, 6
  %v447 = vsel %vm125, %v446, 0
  %449 = vmatprep.subr.mxu0 0.0
  %450 = vmatpush1.msra.mxu0 0.0
  %451 = vmatprep.subr.mxu0 0.0
  %452 = vmatpush1.msra.mxu0 0.0
  %453 = vmatprep.subr.mxu0 0.0
  %454 = vmatpush1.msra.mxu0 0.0
  %455 = vmatprep.subr.mxu0 0.0
  %456 = vmatpush1.msra.mxu0 0.0
  %457 = vmatprep.subr.mxu0 0.0
  %458 = vmatpush1.msra.mxu0 0.0
  %459 = vmatprep.subr.mxu0 0.0
  %460 = vmatpush1.msra.mxu0 0.0
  %461 = vmatprep.subr.mxu0 0.0
  %462 = vmatpush1.msra.mxu0 0.0
  %463 = vmatprep.subr.mxu0 0.0
  %464 = vmatpush1.msra.mxu0 0.0
  %465 = vmatprep.subr.mxu0 0.0
  %466 = vmatpush1.msra.mxu0 0.0
  %467 = vmatprep.subr.mxu0 0.0
  %468 = vmatpush1.msra.mxu0 0.0
  %469 = vmatprep.subr.mxu0 0.0
  %470 = vmatpush1.msra.mxu0 0.0
  %471 = vmatprep.subr.mxu0 0.0
  %472 = vmatpush1.msra.mxu0 0.0
  %473 = vmatprep.subr.mxu0 0.0
  %474 = vmatpush1.msra.mxu0 %v28
  %475 = vmatprep.subr.mxu0 0.0
  %476 = vmatpush1.msra.mxu0 %v27
  %477 = vmatprep.subr.mxu0 0.0
  %478 = vmatpush1.msra.mxu0 %v26
  %479 = vmatprep.subr.mxu0 0.0
  %480 = vmatpush1.msra.mxu0 %v25
  %481 = vmatprep.subr.mxu0 0.0
  %482 = vmatpush2.msra.mxu0 0.0
  %483 = vmatprep.subr.mxu0 0.0
  %484 = vmatpush2.msra.mxu0 0.0
  %485 = vmatprep.subr.mxu0 0.0
  %486 = vmatpush2.msra.mxu0 0.0
  %487 = vmatprep.subr.mxu0 0.0
  %488 = vmatpush2.msra.mxu0 0.0
  %489 = vmatprep.subr.mxu0 0.0
  %490 = vmatpush2.msra.mxu0 0.0
  %491 = vmatprep.subr.mxu0 0.0
  %492 = vmatpush2.msra.mxu0 0.0
  %493 = vmatprep.subr.mxu0 0.0
  %494 = vmatpush2.msra.mxu0 0.0
  %495 = vmatprep.subr.mxu0 0.0
  %496 = vmatpush2.msra.mxu0 0.0
  %497 = vmatprep.subr.mxu0 0.0
  %498 = vmatpush2.msra.mxu0 0.0
  %499 = vmatprep.subr.mxu0 0.0
  %500 = vmatpush2.msra.mxu0 0.0
  %501 = vmatprep.subr.mxu0 0.0
  %502 = vmatpush2.msra.mxu0 0.0
  %503 = vmatprep.subr.mxu0 0.0
  %504 = vmatpush2.msra.mxu0 0.0
  %505 = vmatprep.subr.mxu0 0.0
  %506 = vmatpush2.msra.mxu0 0.0
  %507 = vmatprep.subr.mxu0 0.0
  %508 = vmatpush2.msra.mxu0 0.0
  %509 = vmatprep.subr.mxu0 0.0
  %510 = vmatpush2.msra.mxu0 0.0
  %511 = vmatprep.subr.mxu0 0.0
  %512 = vmatpush2.msra.mxu0 0.0
  %513 = vmatprep.mubr.f32.mxu0 0.0
  %514 = vmatmul.mubr.f32.gmra.mxu0 %v447
  %v515 = vpop.f32.mrf.mxu0
  %v516 = vadd.f32 0.0, %v515
  %v517 = vpop.f32.mrf.mxu0
  %518 = vdwg.mxu0
  %v519 = vadd.f32 %v122, %v516
  %v520 = vtanh.pop %v519
  %521 = vst.msk [vmem:[#allocation2 + $0x8] sm:$0x3] %vm201, %v520
  %v523 = vsel %vm125, %v520, 0
  %525 = vmatprep.subr.mxu0 0.0
  %526 = vmatpush1.msra.mxu0 0.0
  %527 = vmatprep.subr.mxu0 0.0
  %528 = vmatpush1.msra.mxu0 0.0
  %529 = vmatprep.subr.mxu0 0.0
  %530 = vmatpush1.msra.mxu0 0.0
  %531 = vmatprep.subr.mxu0 0.0
  %532 = vmatpush1.msra.mxu0 0.0
  %533 = vmatprep.subr.mxu0 0.0
  %534 = vmatpush1.msra.mxu0 0.0
  %535 = vmatprep.subr.mxu0 0.0
  %536 = vmatpush1.msra.mxu0 0.0
  %537 = vmatprep.subr.mxu0 0.0
  %538 = vmatpush1.msra.mxu0 0.0
  %539 = vmatprep.subr.mxu0 0.0
  %540 = vmatpush1.msra.mxu0 0.0
  %541 = vmatprep.subr.mxu0 0.0
  %542 = vmatpush1.msra.mxu0 0.0
  %543 = vmatprep.subr.mxu0 0.0
  %544 = vmatpush1.msra.mxu0 0.0
  %545 = vmatprep.subr.mxu0 0.0
  %546 = vmatpush1.msra.mxu0 0.0
  %547 = vmatprep.subr.mxu0 0.0
  %548 = vmatpush1.msra.mxu0 0.0
  %549 = vmatprep.subr.mxu0 0.0
  %550 = vmatpush1.msra.mxu0 %v28
  %551 = vmatprep.subr.mxu0 0.0
  %552 = vmatpush1.msra.mxu0 %v27
  %553 = vmatprep.subr.mxu0 0.0
  %554 = vmatpush1.msra.mxu0 %v26
  %555 = vmatprep.subr.mxu0 0.0
  %556 = vmatpush1.msra.mxu0 %v25
  %557 = vmatprep.subr.mxu0 0.0
  %558 = vmatpush2.msra.mxu0 0.0
  %559 = vmatprep.subr.mxu0 0.0
  %560 = vmatpush2.msra.mxu0 0.0
  %561 = vmatprep.subr.mxu0 0.0
  %562 = vmatpush2.msra.mxu0 0.0
  %563 = vmatprep.subr.mxu0 0.0
  %564 = vmatpush2.msra.mxu0 0.0
  %565 = vmatprep.subr.mxu0 0.0
  %566 = vmatpush2.msra.mxu0 0.0
  %567 = vmatprep.subr.mxu0 0.0
  %568 = vmatpush2.msra.mxu0 0.0
  %569 = vmatprep.subr.mxu0 0.0
  %570 = vmatpush2.msra.mxu0 0.0
  %571 = vmatprep.subr.mxu0 0.0
  %572 = vmatpush2.msra.mxu0 0.0
  %573 = vmatprep.subr.mxu0 0.0
  %574 = vmatpush2.msra.mxu0 0.0
  %575 = vmatprep.subr.mxu0 0.0
  %576 = vmatpush2.msra.mxu0 0.0
  %577 = vmatprep.subr.mxu0 0.0
  %578 = vmatpush2.msra.mxu0 0.0
  %579 = vmatprep.subr.mxu0 0.0
  %580 = vmatpush2.msra.mxu0 0.0
  %581 = vmatprep.subr.mxu0 0.0
  %582 = vmatpush2.msra.mxu0 0.0
  %583 = vmatprep.subr.mxu0 0.0
  %584 = vmatpush2.msra.mxu0 0.0
  %585 = vmatprep.subr.mxu0 0.0
  %586 = vmatpush2.msra.mxu0 0.0
  %587 = vmatprep.subr.mxu0 0.0
  %588 = vmatpush2.msra.mxu0 0.0
  %589 = vmatprep.mubr.f32.mxu0 0.0
  %590 = vmatmul.mubr.f32.gmra.mxu0 %v523
  %v591 = vpop.f32.mrf.mxu0
  %v592 = vadd.f32 0.0, %v591
  %v593 = vpop.f32.mrf.mxu0
  %594 = vdwg.mxu0
  %v596 = vrot.slane %v592, 6
  %v598 = vadd.f32 %v122, %v596
  %v599 = vtanh.pop %v598
  %600 = vst.msk [vmem:[#allocation2 + $0x8] sm:$0xc] %vm281, %v599
  %v602 = vrot.slane %v599, 2
  %v603 = vsel %vm125, %v602, 0
  %605 = vmatprep.subr.mxu0 0.0
  %606 = vmatpush1.msra.mxu0 0.0
  %607 = vmatprep.subr.mxu0 0.0
  %608 = vmatpush1.msra.mxu0 0.0
  %609 = vmatprep.subr.mxu0 0.0
  %610 = vmatpush1.msra.mxu0 0.0
  %611 = vmatprep.subr.mxu0 0.0
  %612 = vmatpush1.msra.mxu0 0.0
  %613 = vmatprep.subr.mxu0 0.0
  %614 = vmatpush1.msra.mxu0 0.0
  %615 = vmatprep.subr.mxu0 0.0
  %616 = vmatpush1.msra.mxu0 0.0
  %617 = vmatprep.subr.mxu0 0.0
  %618 = vmatpush1.msra.mxu0 0.0
  %619 = vmatprep.subr.mxu0 0.0
  %620 = vmatpush1.msra.mxu0 0.0
  %621 = vmatprep.subr.mxu0 0.0
  %622 = vmatpush1.msra.mxu0 0.0
  %623 = vmatprep.subr.mxu0 0.0
  %624 = vmatpush1.msra.mxu0 0.0
  %625 = vmatprep.subr.mxu0 0.0
  %626 = vmatpush1.msra.mxu0 0.0
  %627 = vmatprep.subr.mxu0 0.0
  %628 = vmatpush1.msra.mxu0 0.0
  %629 = vmatprep.subr.mxu0 0.0
  %630 = vmatpush1.msra.mxu0 %v28
  %631 = vmatprep.subr.mxu0 0.0
  %632 = vmatpush1.msra.mxu0 %v27
  %633 = vmatprep.subr.mxu0 0.0
  %634 = vmatpush1.msra.mxu0 %v26
  %635 = vmatprep.subr.mxu0 0.0
  %636 = vmatpush1.msra.mxu0 %v25
  %637 = vmatprep.subr.mxu0 0.0
  %638 = vmatpush2.msra.mxu0 0.0
  %639 = vmatprep.subr.mxu0 0.0
  %640 = vmatpush2.msra.mxu0 0.0
  %641 = vmatprep.subr.mxu0 0.0
  %642 = vmatpush2.msra.mxu0 0.0
  %643 = vmatprep.subr.mxu0 0.0
  %644 = vmatpush2.msra.mxu0 0.0
  %645 = vmatprep.subr.mxu0 0.0
  %646 = vmatpush2.msra.mxu0 0.0
  %647 = vmatprep.subr.mxu0 0.0
  %648 = vmatpush2.msra.mxu0 0.0
  %649 = vmatprep.subr.mxu0 0.0
  %650 = vmatpush2.msra.mxu0 0.0
  %651 = vmatprep.subr.mxu0 0.0
  %652 = vmatpush2.msra.mxu0 0.0
  %653 = vmatprep.subr.mxu0 0.0
  %654 = vmatpush2.msra.mxu0 0.0
  %655 = vmatprep.subr.mxu0 0.0
  %656 = vmatpush2.msra.mxu0 0.0
  %657 = vmatprep.subr.mxu0 0.0
  %658 = vmatpush2.msra.mxu0 0.0
  %659 = vmatprep.subr.mxu0 0.0
  %660 = vmatpush2.msra.mxu0 0.0
  %661 = vmatprep.subr.mxu0 0.0
  %662 = vmatpush2.msra.mxu0 0.0
  %663 = vmatprep.subr.mxu0 0.0
  %664 = vmatpush2.msra.mxu0 0.0
  %665 = vmatprep.subr.mxu0 0.0
  %666 = vmatpush2.msra.mxu0 0.0
  %667 = vmatprep.subr.mxu0 0.0
  %668 = vmatpush2.msra.mxu0 0.0
  %669 = vmatprep.mubr.f32.mxu0 0.0
  %670 = vmatmul.mubr.f32.gmra.mxu0 %v603
  %v671 = vpop.f32.mrf.mxu0
  %v672 = vadd.f32 0.0, %v671
  %v673 = vpop.f32.mrf.mxu0
  %674 = vdwg.mxu0
  %v676 = vrot.slane %v672, 4
  %v678 = vadd.f32 %v122, %v676
  %v679 = vtanh.pop %v678
  %680 = vst.msk [vmem:[#allocation2 + $0x8] sm:$0x30] %vm362, %v679
  %v682 = vrot.slane %v679, 4
  %v683 = vsel %vm125, %v682, 0
  %685 = vmatprep.subr.mxu0 0.0
  %686 = vmatpush1.msra.mxu0 0.0
  %687 = vmatprep.subr.mxu0 0.0
  %688 = vmatpush1.msra.mxu0 0.0
  %689 = vmatprep.subr.mxu0 0.0
  %690 = vmatpush1.msra.mxu0 0.0
  %691 = vmatprep.subr.mxu0 0.0
  %692 = vmatpush1.msra.mxu0 0.0
  %693 = vmatprep.subr.mxu0 0.0
  %694 = vmatpush1.msra.mxu0 0.0
  %695 = vmatprep.subr.mxu0 0.0
  %696 = vmatpush1.msra.mxu0 0.0
  %697 = vmatprep.subr.mxu0 0.0
  %698 = vmatpush1.msra.mxu0 0.0
  %699 = vmatprep.subr.mxu0 0.0
  %700 = vmatpush1.msra.mxu0 0.0
  %701 = vmatprep.subr.mxu0 0.0
  %702 = vmatpush1.msra.mxu0 0.0
  %703 = vmatprep.subr.mxu0 0.0
  %704 = vmatpush1.msra.mxu0 0.0
  %705 = vmatprep.subr.mxu0 0.0
  %706 = vmatpush1.msra.mxu0 0.0
  %707 = vmatprep.subr.mxu0 0.0
  %708 = vmatpush1.msra.mxu0 0.0
  %709 = vmatprep.subr.mxu0 0.0
  %710 = vmatpush1.msra.mxu0 %v28
  %711 = vmatprep.subr.mxu0 0.0
  %712 = vmatpush1.msra.mxu0 %v27
  %713 = vmatprep.subr.mxu0 0.0
  %714 = vmatpush1.msra.mxu0 %v26
  %715 = vmatprep.subr.mxu0 0.0
  %716 = vmatpush1.msra.mxu0 %v25
  %717 = vmatprep.subr.mxu0 0.0
  %718 = vmatpush2.msra.mxu0 0.0
  %719 = vmatprep.subr.mxu0 0.0
  %720 = vmatpush2.msra.mxu0 0.0
  %721 = vmatprep.subr.mxu0 0.0
  %722 = vmatpush2.msra.mxu0 0.0
  %723 = vmatprep.subr.mxu0 0.0
  %724 = vmatpush2.msra.mxu0 0.0
  %725 = vmatprep.subr.mxu0 0.0
  %726 = vmatpush2.msra.mxu0 0.0
  %727 = vmatprep.subr.mxu0 0.0
  %728 = vmatpush2.msra.mxu0 0.0
  %729 = vmatprep.subr.mxu0 0.0
  %730 = vmatpush2.msra.mxu0 0.0
  %731 = vmatprep.subr.mxu0 0.0
  %732 = vmatpush2.msra.mxu0 0.0
  %733 = vmatprep.subr.mxu0 0.0
  %734 = vmatpush2.msra.mxu0 0.0
  %735 = vmatprep.subr.mxu0 0.0
  %736 = vmatpush2.msra.mxu0 0.0
  %737 = vmatprep.subr.mxu0 0.0
  %738 = vmatpush2.msra.mxu0 0.0
  %739 = vmatprep.subr.mxu0 0.0
  %740 = vmatpush2.msra.mxu0 0.0
  %741 = vmatprep.subr.mxu0 0.0
  %742 = vmatpush2.msra.mxu0 0.0
  %743 = vmatprep.subr.mxu0 0.0
  %744 = vmatpush2.msra.mxu0 0.0
  %745 = vmatprep.subr.mxu0 0.0
  %746 = vmatpush2.msra.mxu0 0.0
  %747 = vmatprep.subr.mxu0 0.0
  %748 = vmatpush2.msra.mxu0 0.0
  %749 = vmatprep.mubr.f32.mxu0 0.0
  %750 = vmatmul.mubr.f32.gmra.mxu0 %v683
  %v751 = vpop.f32.mrf.mxu0
  %v752 = vadd.f32 0.0, %v751
  %v753 = vpop.f32.mrf.mxu0
  %754 = vdwg.mxu0
  %v756 = vrot.slane %v752, 2
  %v758 = vadd.f32 %v122, %v756
  %v759 = vtanh.pop %v758
  %760 = vst.msk [vmem:[#allocation2 + $0x8] sm:$0xc0] %vm443, %v759
  %v761 = vld [vmem:[#allocation2] sm:$0xff]
  %v762 = vld [vmem:[#allocation2 + $0x8] sm:$0xff]
  %v763 = vld [vmem:[%s4] sm:$0xff]
  %v764 = vld [vmem:[%s4 + $0x8] sm:$0xff]
  %v765 = vld [vmem:[%s4 + $0x10] sm:$0xff]
  %v766 = vld [vmem:[%s4 + $0x18] sm:$0xff]
  %v767 = vld [vmem:[#allocation3] sm:$0x1]
  %v769 = vlaneseq
  %v770 = vshrl.u32 %v769, 7
  %v771 = vsub.s32 0, %v770
  %v772 = vrot.slane %v767, %v771
  %v775 = vsel %vm125, %v761, 0
  %v778 = vsel %vm125, %v762, 0
  %780 = vmatprep.subr.mxu0 0.0
  %781 = vmatpush1.msra.mxu0 0.0
  %782 = vmatprep.subr.mxu0 0.0
  %783 = vmatpush1.msra.mxu0 0.0
  %784 = vmatprep.subr.mxu0 0.0
  %785 = vmatpush1.msra.mxu0 0.0
  %786 = vmatprep.subr.mxu0 0.0
  %787 = vmatpush1.msra.mxu0 0.0
  %788 = vmatprep.subr.mxu0 0.0
  %789 = vmatpush1.msra.mxu0 0.0
  %790 = vmatprep.subr.mxu0 0.0
  %791 = vmatpush1.msra.mxu0 0.0
  %792 = vmatprep.subr.mxu0 0.0
  %793 = vmatpush1.msra.mxu0 0.0
  %794 = vmatprep.subr.mxu0 0.0
  %795 = vmatpush1.msra.mxu0 0.0
  %796 = vmatprep.subr.mxu0 0.0
  %797 = vmatpush1.msra.mxu0 0.0
  %798 = vmatprep.subr.mxu0 0.0
  %799 = vmatpush1.msra.mxu0 0.0
  %800 = vmatprep.subr.mxu0 0.0
  %801 = vmatpush1.msra.mxu0 0.0
  %802 = vmatprep.subr.mxu0 0.0
  %803 = vmatpush1.msra.mxu0 0.0
  %804 = vmatprep.subr.mxu0 0.0
  %805 = vmatpush1.msra.mxu0 %v766
  %806 = vmatprep.subr.mxu0 0.0
  %807 = vmatpush1.msra.mxu0 %v765
  %808 = vmatprep.subr.mxu0 0.0
  %809 = vmatpush1.msra.mxu0 %v764
  %810 = vmatprep.subr.mxu0 0.0
  %811 = vmatpush1.msra.mxu0 %v763
  %812 = vmatprep.subr.mxu0 0.0
  %813 = vmatpush2.msra.mxu0 0.0
  %814 = vmatprep.subr.mxu0 0.0
  %815 = vmatpush2.msra.mxu0 0.0
  %816 = vmatprep.subr.mxu0 0.0
  %817 = vmatpush2.msra.mxu0 0.0
  %818 = vmatprep.subr.mxu0 0.0
  %819 = vmatpush2.msra.mxu0 0.0
  %820 = vmatprep.subr.mxu0 0.0
  %821 = vmatpush2.msra.mxu0 0.0
  %822 = vmatprep.subr.mxu0 0.0
  %823 = vmatpush2.msra.mxu0 0.0
  %824 = vmatprep.subr.mxu0 0.0
  %825 = vmatpush2.msra.mxu0 0.0
  %826 = vmatprep.subr.mxu0 0.0
  %827 = vmatpush2.msra.mxu0 0.0
  %828 = vmatprep.subr.mxu0 0.0
  %829 = vmatpush2.msra.mxu0 0.0
  %830 = vmatprep.subr.mxu0 0.0
  %831 = vmatpush2.msra.mxu0 0.0
  %832 = vmatprep.subr.mxu0 0.0
  %833 = vmatpush2.msra.mxu0 0.0
  %834 = vmatprep.subr.mxu0 0.0
  %835 = vmatpush2.msra.mxu0 0.0
  %836 = vmatprep.subr.mxu0 0.0
  %837 = vmatpush2.msra.mxu0 0.0
  %838 = vmatprep.subr.mxu0 0.0
  %839 = vmatpush2.msra.mxu0 0.0
  %840 = vmatprep.subr.mxu0 0.0
  %841 = vmatpush2.msra.mxu0 0.0
  %842 = vmatprep.subr.mxu0 0.0
  %843 = vmatpush2.msra.mxu0 0.0
  %844 = vmatprep.mubr.f32.mxu0 0.0
  %845 = vmatmul.mubr.f32.gmra.mxu0 %v775
  %v846 = vpop.f32.mrf.mxu0
  %v847 = vadd.f32 %v772, %v846
  %v848 = vpop.f32.mrf.mxu0
  %849 = vmatprep.mubr.f32.mxu0 0.0
  %850 = vmatmul.mubr.f32.gmra.mxu0 %v778
  %v851 = vpop.f32.mrf.mxu0
  %v852 = vadd.f32 %v772, %v851
  %v853 = vpop.f32.mrf.mxu0
  %854 = vdwg.mxu0
  %v855 = vtanh.pop %v847
  %v856 = vtanh.pop %v852
  %vm857 = vcmask 7168
  %858 = vst.msk [vmem:[%s6] sm:$0xff] %vm857, %v855
  %859 = vst.msk [vmem:[%s6 + $0x8] sm:$0xff] %vm857, %v856
  // Predicated region
  $region26: #{net_forward.1} parent=0 // pred_check
    _
  $region27: #{net_forward.1} parent=0 // pred_check_branch
    %861 = sbr.rel (0) target = $region29
  $region28: #{net_forward.1} parent=0 // pred_region
    _
  $region29: #{net_forward.1} parent=0 // pred_fallthru
    _
  // Predicated region
  $region30: #{net_forward.1} parent=0 // pred_check
    _
  $region31: #{net_forward.1} parent=0 // pred_check_branch
    %863 = sbr.rel (0) target = $region33
  $region32: #{net_forward.1} parent=0 // pred_region
    _
  $region33: #{net_forward.1} parent=0 // pred_fallthru
    _

</llo_original>
